<compile_context>
chip_gen: v6e
topology: v6e:2x2x1
jax: 0.10.0
libtpu: 0.0.40
codegen_flags: <defaults>
</compile_context>

<pallas_src>
import functools

import jax
import jax.numpy as jnp
from jax.experimental import pallas as pl
from jax.experimental.pallas import tpu as pltpu


def _round_up(x, m):
    return ((x + m - 1) // m) * m


# ---------------------------------------------------------------------------
# Fused (Linear + bias [+ ReLU]) kernel: full-K reduction per (i, j) block,
# f32 accumulate on the MXU, epilogue fused, no scratch.
# ---------------------------------------------------------------------------
def _linear_kernel(x_ref, w_ref, b_ref, o_ref, *, apply_relu):
    acc = jnp.dot(x_ref[...], w_ref[...], preferred_element_type=jnp.float32)
    out = acc + b_ref[...]                      # bias broadcast over rows (f32)
    if apply_relu:
        out = jnp.maximum(out, 0.0)
    o_ref[...] = out.astype(o_ref.dtype)


def pallas_linear(x, w, b2, *, apply_relu, out_dtype):
    """y = relu?(x @ w + b).  x: (M, K) bf16, w: (K, N) bf16, b2: (1, N) f32."""
    M, K = x.shape
    Kw, N = w.shape
    assert K == Kw and b2.shape == (1, N)
    assert M % 8 == 0 and K % 8 == 0 and N % 256 == 0

    tm = M if M <= 512 else 256                 # batch is tiny in practice
    assert M % tm == 0
    tn = N // 2                                 # >=2 j blocks (v7x megacore)
    assert tn % 128 == 0

    flops = 2 * M * K * N
    bytes_accessed = int(
        x.size * x.dtype.itemsize
        + w.size * w.dtype.itemsize
        + b2.size * b2.dtype.itemsize
        + M * N * jnp.dtype(out_dtype).itemsize
    )

    kernel = functools.partial(_linear_kernel, apply_relu=apply_relu)
    return pl.pallas_call(
        kernel,
        out_shape=jax.ShapeDtypeStruct((M, N), out_dtype),
        grid_spec=pltpu.PrefetchScalarGridSpec(
            num_scalar_prefetch=0,
            grid=(M // tm, N // tn),
            in_specs=[
                pl.BlockSpec((tm, K), lambda i, j: (i, 0)),   # activations
                pl.BlockSpec((K, tn), lambda i, j: (0, j)),   # weight stream
                pl.BlockSpec((1, tn), lambda i, j: (0, j)),   # bias
            ],
            out_specs=pl.BlockSpec((tm, tn), lambda i, j: (i, j)),
        ),
        compiler_params=pltpu.CompilerParams(
            dimension_semantics=("parallel", "parallel"),
            vmem_limit_bytes=32 * 1024 * 1024,
        ),
        cost_estimate=pl.CostEstimate(
            flops=flops, transcendentals=0, bytes_accessed=bytes_accessed),
    )(x, w, b2)


# ---------------------------------------------------------------------------
# Parameter init (matches nn.init.xavier_normal_ on weight, zeros on bias).
# All layout work is done here, once:
#   * weight stored transposed (in, out), the input dim padded to a multiple
#     of 128 and every output dim padded to a multiple of 256 (lane-dense
#     blocks; tn = N/2 stays 128-aligned).  Padded rows/cols are zero so the
#     math is unchanged; the next layer's padded input rows line up.
#   * weight cast to bf16 for streaming, bias kept f32 as a (1, N) row.
# Each entry: (w_bf16 (K_pad, N_pad), b_f32 (1, N_pad), n_true).
# ---------------------------------------------------------------------------
def init_fnn_relu_params(key, input_shape, fc_units=2048, num_classes=1600):
    dims = [(input_shape, fc_units),
            (fc_units, fc_units),
            (fc_units, fc_units),
            (fc_units, num_classes)]
    params = []
    keys = jax.random.split(key, len(dims))
    k_in = _round_up(input_shape, 128)      # padded input dim of current layer
    for k, (fan_in, fan_out) in zip(keys, dims):
        std = (2.0 / (fan_in + fan_out)) ** 0.5
        w = std * jax.random.normal(k, (fan_in, fan_out), dtype=jnp.float32)
        b = jnp.zeros((fan_out,), dtype=jnp.float32)
        n_pad = _round_up(fan_out, 256)
        w_p = jnp.zeros((k_in, n_pad), jnp.float32).at[:fan_in, :fan_out].set(w)
        b_p = jnp.zeros((1, n_pad), jnp.float32).at[0, :fan_out].set(b)
        params.append((w_p.astype(jnp.bfloat16), b_p, fan_out))
        k_in = n_pad
    return params


def fnn_relu_forward(params, x):
    """Inference forward of FNN_Relu: 4 Linear layers, ReLU on first three."""
    M, K = x.shape
    Kp = params[0][0].shape[0]                   # padded input feature dim
    Mp = _round_up(max(M, 8), 8) if M <= 512 else _round_up(M, 256)
    h = x.astype(jnp.bfloat16)
    if Mp != M or Kp != K:
        h = jnp.pad(h, ((0, Mp - M), (0, Kp - K)))
    n_layers = len(params)
    for li, (w, b2, _) in enumerate(params):
        is_last = li == n_layers - 1
        out_dtype = jnp.float32 if is_last else jnp.bfloat16
        h = pallas_linear(h, w, b2, apply_relu=not is_last, out_dtype=out_dtype)
    return h[:M, :params[-1][2]]


# ---------------------------------------------------------------------------
if __name__ == "__main__":
    key = jax.random.PRNGKey(0)
    k_param, k_x = jax.random.split(key)

    batch = 2
    input_shape = 256            # small feature dim; fc_units fixed by module
    fc_units = 2048
    num_classes = 1600

    params = init_fnn_relu_params(
        k_param, input_shape, fc_units=fc_units, num_classes=num_classes
    )
    x = jax.random.normal(k_x, (batch, input_shape), dtype=jnp.float32)

    out = fnn_relu_forward(params, x)
    out = jax.block_until_ready(out)

    # Pure-JAX reference with identical quantization (bf16 weights /
    # activations, f32 accumulation); dropout = identity in inference.
    Kp = params[0][0].shape[0]
    h = x.astype(jnp.bfloat16)
    if Kp != x.shape[1]:
        h = jnp.pad(h, ((0, 0), (0, Kp - x.shape[1])))
    ref = None
    for li, (w, b2, n_true) in enumerate(params):
        acc = jnp.dot(h, w, preferred_element_type=jnp.float32) + b2
        if li != len(params) - 1:
            h = jnp.maximum(acc, 0.0).astype(jnp.bfloat16)
        else:
            ref = acc[:, :n_true]
    ref = jax.block_until_ready(ref)

    assert out.shape == (batch, num_classes), out.shape
    assert jnp.allclose(out, ref, atol=2e-2, rtol=2e-2), float(
        jnp.max(jnp.abs(out - ref))
    )
    print("KERNEL_OK")
</pallas_src>

<mosaic_0001>
module attributes {stable_mosaic.version = 11 : i64} {
  func.func @_linear_kernel(%arg0: i32, %arg1: i32, %arg2: memref<8x256xbf16, #tpu.memory_space<vmem>>, %arg3: memref<256x1024xbf16, #tpu.memory_space<vmem>>, %arg4: memref<1x1024xf32, #tpu.memory_space<vmem>>, %arg5: memref<8x1024xbf16, #tpu.memory_space<vmem>>) attributes {dimension_semantics = [#tpu.dimension_semantics<parallel>, #tpu.dimension_semantics<parallel>], iteration_bounds = array<i64: 1, 2>, scalar_prefetch = 0 : i64, scratch_operands = 0 : i64, tpu.core_type = #tpu.core_type<tc>, window_params = [{transform_indices = @transform_0, window_bounds = array<i64: 8, 256>}, {transform_indices = @transform_1, window_bounds = array<i64: 256, 1024>}, {transform_indices = @transform_2, window_bounds = array<i64: 1, 1024>}, {transform_indices = @transform_3, window_bounds = array<i64: 8, 1024>}]} {
    %c0 = arith.constant 0 : index
    %c0_0 = arith.constant 0 : index
    %0 = vector.load %arg2[%c0, %c0_0] : memref<8x256xbf16, #tpu.memory_space<vmem>>, vector<8x256xbf16>
    %c0_1 = arith.constant 0 : index
    %c0_2 = arith.constant 0 : index
    %1 = vector.load %arg3[%c0_1, %c0_2] : memref<256x1024xbf16, #tpu.memory_space<vmem>>, vector<256x1024xbf16>
    %cst = arith.constant dense<0.000000e+00> : vector<8x1024xf32>
    %2 = tpu.matmul %0, %1, %cst {dimension_numbers = #tpu.dot_dimension_numbers<[1], [0], [0], [1], [0, 0, 1, 1], [], []>} : vector<8x256xbf16>, vector<256x1024xbf16>, vector<8x1024xf32> -> vector<8x1024xf32>
    %c0_3 = arith.constant 0 : index
    %c0_4 = arith.constant 0 : index
    %3 = vector.load %arg4[%c0_3, %c0_4] : memref<1x1024xf32, #tpu.memory_space<vmem>>, vector<1x1024xf32>
    %4 = vector.broadcast %3 : vector<1x1024xf32> to vector<8x1024xf32>
    %5 = arith.addf %2, %4 : vector<8x1024xf32>
    %cst_5 = arith.constant 0.000000e+00 : f32
    %6 = vector.broadcast %cst_5 : f32 to vector<8x1024xf32>
    %7 = arith.maximumf %5, %6 : vector<8x1024xf32>
    %8 = arith.truncf %7 : vector<8x1024xf32> to vector<8x1024xbf16>
    %c0_6 = arith.constant 0 : index
    %c0_7 = arith.constant 0 : index
    %9 = vector.load %arg5[%c0_6, %c0_7] : memref<8x1024xbf16, #tpu.memory_space<vmem>>, vector<8x1024xbf16>
    tpu.vector_store %arg5[%c0_6, %c0_7], %8 {strides = array<i32>} : memref<8x1024xbf16, #tpu.memory_space<vmem>>, vector<8x1024xbf16>,
    return
  }
  func.func @transform_0(%arg0: i32, %arg1: i32) -> (i32, i32) {
    %c0_i32 = arith.constant 0 : i32
    %c0_i32_0 = arith.constant 0 : i32
    return %arg0, %c0_i32 : i32, i32
  }
  func.func @transform_1(%arg0: i32, %arg1: i32) -> (i32, i32) {
    %c0_i32 = arith.constant 0 : i32
    %c0_i32_0 = arith.constant 0 : i32
    return %c0_i32, %arg1 : i32, i32
  }
  func.func @transform_2(%arg0: i32, %arg1: i32) -> (i32, i32) {
    %c0_i32 = arith.constant 0 : i32
    %c0_i32_0 = arith.constant 0 : i32
    return %c0_i32, %arg1 : i32, i32
  }
  func.func @transform_3(%arg0: i32, %arg1: i32) -> (i32, i32) {
    %c0_i32 = arith.constant 0 : i32
    return %arg0, %arg1 : i32, i32
  }
}

</mosaic_0001>

<llo_original>
// kernel: tpu_custom_call.1
$region0: #{tpu_custom_call.1}
  #allocation0 [shape = 'u32[]', space=smem, size = 0x4, offset = 0x4, fixed_abs, tag = 'smem constant byte address 0x4 - core index']
  #allocation1 [shape = 'u32[144,128]{1,0:T(1,128)}', space=vmem, size = 0x12000, scoped, tag = 'internal scratch']
  %s0 = inlined_call_operand.hbm [shape: bf16[8,256], index: 0, kind: input, shape index: {}]
  %s1 = inlined_call_operand.hbm [shape: bf16[256,2048], index: 1, kind: input, shape index: {}]
  %s2 = inlined_call_operand.hbm [shape: f32[1,2048], index: 2, kind: input, shape index: {}]
  %s3 = inlined_call_operand.hbm [shape: bf16[8,2048], index: 3, kind: output, shape index: {}]
  %s4 = sld [smem:[#allocation0]]
  $region57: #{tpu_custom_call.1} parent=0
    _
  %s6 = ssub.s32 1, %s4
  %s7 = scalar_select 0, %s6, %s4
  $region1: #{tpu_custom_call.1} parent=0
    #allocation2 [shape = 'u8[4096]{0}', space=vmem, size = 0x1000, scoped, tag = 'input window, operand 0, single buffered']
    #allocation3 [shape = 's32[2]{0}', space=sflag, size = 0x8, scoped, tag = 'scoped memory for tpu_custom_call.1']
    #allocation4 [shape = 's32[2]{0}', space=sflag, size = 0x8, scoped, tag = 'scoped memory for tpu_custom_call.1']
    #allocation5 [shape = 'u8[1048576]{0}', space=vmem, size = 0x100000, scoped, tag = 'input window, operand 1']
    #allocation6 [shape = 's32[2]{0}', space=sflag, size = 0x8, scoped, tag = 'scoped memory for tpu_custom_call.1']
    #allocation7 [shape = 'u8[8192]{0}', space=vmem, size = 0x2000, scoped, tag = 'input window, operand 2']
    #allocation8 [shape = 'u8[32768]{0}', space=vmem, size = 0x8000, scoped, tag = 'output window, operand 0']
    %8 = vsyncpa [#allocation3], 0
    %9 = vsyncpa [#allocation6], 0
    %s10 = scalar_lea.sflag [#allocation6], 1
    %11 = vsyncpa %s10, 0
    %12 = vsyncpa [#allocation4], 0
    %s13 = scalar_lea.sflag [#allocation4], 1
    %14 = vsyncpa %s13, 0
    loop: start=0, step=1, limit=4
    $region2: #{tpu_custom_call.1} parent=1 // loop_pre_header
      _
    $region3: #{tpu_custom_call.1} parent=1 // loop_header
      %s16 = sphi 0, %s20
      %p17 = scmp.ge.s32.totalorder %s16, 4
      %s23 = sphi 0, %s35
      %s24 = sphi 0, %s31
      %s25 = sphi 0, %s23
      %s26 = sphi 0, %s24
      %s27 = sphi 0, %s25
      %s28 = sphi 0, %s26
      %s38 = sphi 0, %s40
      %s41 = sphi 0, %s38
      %s42 = sphi 0, %s41
      %s58 = sphi 0, %s42
      %s64 = sphi 0, %s66
      %s67 = sphi 0, %s64
      %s68 = sphi 0, %s67
      %s84 = sphi 0, %s68
      %s90 = sphi 0, %s92
      %s93 = sphi 0, %s90
      %s94 = sphi 0, %s93
      %s110 = sphi 0, %s94
      %s118 = sphi 0, %s120
      %s121 = sphi 0, %s118
      %s122 = sphi 0, %s121
      %s138 = sphi 0, %s122
    $region4: #{tpu_custom_call.1} parent=1 // loop_header_branch
      %19 = sbr.rel (%p17) target = $region8
    $region5: #{tpu_custom_call.1} parent=1 // loop_body
      %s21 = ssub.s32 %s16, 1
      %s22 = ssub.s32 %s16, 2
      %s29 = sadd.s32 1, %s24
      %p30 = scmp.ge.s32.totalorder %s29, 2
      %s31 = scalar_select %p30, 0, %s29
      %s32 = sadd.s32 1, %s23
      %s33 = scalar_select %p30, %s32, %s23
      %p34 = scmp.ge.s32.totalorder %s33, 1
      %s35 = scalar_select %p34, 0, %s33
      %s36 = ssub.s32 %s23, %s35
      %p37 = scmp.eq.s32.totalorder %s36, 0
      %s39 = sadd.s32 %s38, 1
      %s40 = scalar_select %p37, %s38, %s39
      %p43 = pneg %p37
      %p44 = scmp.eq.s32.totalorder %s16, 1
      %p45 = por %p43, %p44
      %p46 = scmp.ne.s32.totalorder %s38, %s41
      %p47 = scmp.eq.s32.totalorder %s16, 0
      %p48 = por %p46, %p47
      %p49 = scmp.ne.s32.totalorder %s38, %s41
      %p50 = scmp.eq.s32.totalorder %s21, 1
      %p51 = por %p49, %p50
      %p52 = scmp.ne.s32.totalorder %s41, %s42
      %p53 = scmp.eq.s32.totalorder %s21, 0
      %p54 = por %p52, %p53
      %p55 = scmp.ne.s32.totalorder %s41, %s42
      %p56 = scmp.eq.s32.totalorder %s22, 1
      %p57 = por %p55, %p56
      %p59 = scmp.ne.s32.totalorder %s42, %s58
      %p60 = scmp.eq.s32.totalorder %s22, 0
      %p61 = por %p59, %p60
      %s62 = ssub.s32 %s24, %s31
      %p63 = scmp.eq.s32.totalorder %s62, 0
      %s65 = sadd.s32 %s64, 1
      %s66 = scalar_select %p63, %s64, %s65
      %p69 = pneg %p63
      %p70 = scmp.eq.s32.totalorder %s16, 1
      %p71 = por %p69, %p70
      %p72 = scmp.ne.s32.totalorder %s64, %s67
      %p73 = scmp.eq.s32.totalorder %s16, 0
      %p74 = por %p72, %p73
      %p75 = scmp.ne.s32.totalorder %s64, %s67
      %p76 = scmp.eq.s32.totalorder %s21, 1
      %p77 = por %p75, %p76
      %p78 = scmp.ne.s32.totalorder %s67, %s68
      %p79 = scmp.eq.s32.totalorder %s21, 0
      %p80 = por %p78, %p79
      %p81 = scmp.ne.s32.totalorder %s67, %s68
      %p82 = scmp.eq.s32.totalorder %s22, 1
      %p83 = por %p81, %p82
      %p85 = scmp.ne.s32.totalorder %s68, %s84
      %p86 = scmp.eq.s32.totalorder %s22, 0
      %p87 = por %p85, %p86
      %s88 = ssub.s32 %s24, %s31
      %p89 = scmp.eq.s32.totalorder %s88, 0
      %s91 = sadd.s32 %s90, 1
      %s92 = scalar_select %p89, %s90, %s91
      %p95 = pneg %p89
      %p96 = scmp.eq.s32.totalorder %s16, 1
      %p97 = por %p95, %p96
      %p98 = scmp.ne.s32.totalorder %s90, %s93
      %p99 = scmp.eq.s32.totalorder %s16, 0
      %p100 = por %p98, %p99
      %p101 = scmp.ne.s32.totalorder %s90, %s93
      %p102 = scmp.eq.s32.totalorder %s21, 1
      %p103 = por %p101, %p102
      %p104 = scmp.ne.s32.totalorder %s93, %s94
      %p105 = scmp.eq.s32.totalorder %s21, 0
      %p106 = por %p104, %p105
      %p107 = scmp.ne.s32.totalorder %s93, %s94
      %p108 = scmp.eq.s32.totalorder %s22, 1
      %p109 = por %p107, %p108
      %p111 = scmp.ne.s32.totalorder %s94, %s110
      %p112 = scmp.eq.s32.totalorder %s22, 0
      %p113 = por %p111, %p112
      %s114 = ssub.s32 %s23, %s35
      %s115 = ssub.s32 %s24, %s31
      %s116 = sor.u32 %s114, %s115
      %p117 = scmp.eq.s32.totalorder %s116, 0
      %s119 = sadd.s32 %s118, 1
      %s120 = scalar_select %p117, %s118, %s119
      %p123 = pneg %p117
      %p124 = scmp.eq.s32.totalorder %s16, 1
      %p125 = por %p123, %p124
      %p126 = scmp.ne.s32.totalorder %s118, %s121
      %p127 = scmp.eq.s32.totalorder %s16, 0
      %p128 = por %p126, %p127
      %p129 = scmp.ne.s32.totalorder %s118, %s121
      %p130 = scmp.eq.s32.totalorder %s21, 1
      %p131 = por %p129, %p130
      %p132 = scmp.ne.s32.totalorder %s121, %s122
      %p133 = scmp.eq.s32.totalorder %s21, 0
      %p134 = por %p132, %p133
      %p135 = scmp.ne.s32.totalorder %s121, %s122
      %p136 = scmp.eq.s32.totalorder %s22, 1
      %p137 = por %p135, %p136
      %p139 = scmp.ne.s32.totalorder %s122, %s138
      %p140 = scmp.eq.s32.totalorder %s22, 0
      %p141 = por %p139, %p140
      %p142 = scmp.le.s32.totalorder 1, %s16
      %p143 = scmp.lt.s32.totalorder %s16, 3
      %p144 = pnand %p142, %p143
      %p145 = pneg %p144
      // Predicated region
      $region9: #{tpu_custom_call.1} parent=5 // pred_check
        _
      $region10: #{tpu_custom_call.1} parent=5 // pred_check_branch
        %147 = sbr.rel (%p144) target = $region12
      $region11: #{tpu_custom_call.1} parent=5 // pred_region
        %s148 = ssub.s32 %s16, 1
        // Predicated region
        $region13: #{tpu_custom_call.1} parent=11 // pred_check
          %p149 = pneg %p54
        $region14: #{tpu_custom_call.1} parent=11 // pred_check_branch
          %151 = sbr.rel (%p149) target = $region16
        $region15: #{tpu_custom_call.1} parent=11 // pred_region
          %s153 = ssub.s32 128, 128
          %154 = vsyncadd [#allocation3], %s153
          %s155 = smul.addr %s25, 2
          %s156 = smul.addr %s155, 64
          %s157 = scalar_lea.hbm %s0, %s156
          %s159 = sshll.u32 [#allocation2], 4
          %s160 = int_to_ptr.vmem [resolvable:$true] %s159
          %162 = dma.hbm_to_vmem [thread:$0]  %s157, 128, %s160, [#allocation3]
        $region16: #{tpu_custom_call.1} parent=11 // pred_fallthru
          _
      $region12: #{tpu_custom_call.1} parent=5 // pred_fallthru
        _
      %p163 = scmp.lt.s32.totalorder %s16, 2
      // Predicated region
      $region17: #{tpu_custom_call.1} parent=5 // pred_check
        %p164 = pneg %p163
      $region18: #{tpu_custom_call.1} parent=5 // pred_check_branch
        %166 = sbr.rel (%p164) target = $region20
      $region19: #{tpu_custom_call.1} parent=5 // pred_region
        // Predicated region
        $region21: #{tpu_custom_call.1} parent=19 // pred_check
          %p167 = pneg %p74
        $region22: #{tpu_custom_call.1} parent=19 // pred_check_branch
          %169 = sbr.rel (%p167) target = $region24
        $region23: #{tpu_custom_call.1} parent=19 // pred_region
          %s170 = sand.u32 %s16, 1
          %s171 = scalar_lea.sflag [#allocation6], %s170
          %s172 = sand.u32 %s64, 1
          %s173 = smul.addr %s172, 1024
          %s174 = scalar_lea.vmem [#allocation5], %s173
          %s175 = smul.u32 8, %s24
          %s177 = ssub.s32 16384, 16384
          %178 = vsyncadd %s171, %s177
          %s179 = smul.addr %s175, 64
          %s180 = scalar_lea.hbm %s1, %s179
          %s181 = sshll.u32 %s174, 4
          %s182 = int_to_ptr.vmem [resolvable:$true] %s181
          %187 = dma.hbm_to_vmem [thread:$0]  %s180, 16384, %s182, %s171, 1024, 512, 32
        $region24: #{tpu_custom_call.1} parent=19 // pred_fallthru
          _
        // Predicated region
        $region25: #{tpu_custom_call.1} parent=19 // pred_check
          %p188 = pneg %p100
        $region26: #{tpu_custom_call.1} parent=19 // pred_check_branch
          %190 = sbr.rel (%p188) target = $region28
        $region27: #{tpu_custom_call.1} parent=19 // pred_region
          %s191 = sand.u32 %s16, 1
          %s192 = scalar_lea.sflag [#allocation6], %s191
          %s193 = sand.u32 %s90, 1
          %s194 = smul.addr %s193, 8
          %s195 = scalar_lea.vmem [#allocation7], %s194
          %s196 = smul.u32 8, %s24
          %s198 = ssub.s32 128, 128
          %199 = vsyncadd %s192, %s198
          %s200 = smul.addr %s196, 16
          %s201 = scalar_lea.hbm %s2, %s200
          %s203 = sshll.u32 %s195, 4
          %s204 = int_to_ptr.vmem [resolvable:$true] %s203
          %206 = dma.hbm_to_vmem [thread:$0]  %s201, 128, %s204, %s192
        $region28: #{tpu_custom_call.1} parent=19 // pred_fallthru
          _
      $region20: #{tpu_custom_call.1} parent=5 // pred_fallthru
        _
      %p207 = scmp.le.s32.totalorder 1, %s16
      %p208 = scmp.lt.s32.totalorder %s16, 3
      %p209 = pnand %p207, %p208
      %p210 = pneg %p209
      // Predicated region
      $region29: #{tpu_custom_call.1} parent=5 // pred_check
        _
      $region30: #{tpu_custom_call.1} parent=5 // pred_check_branch
        %212 = sbr.rel (%p209) target = $region32
      $region31: #{tpu_custom_call.1} parent=5 // pred_region
        %s213 = ssub.s32 %s16, 1
        // Predicated region
        $region33: #{tpu_custom_call.1} parent=31 // pred_check
          %p214 = pneg %p54
        $region34: #{tpu_custom_call.1} parent=31 // pred_check_branch
          %216 = sbr.rel (%p214) target = $region36
        $region35: #{tpu_custom_call.1} parent=31 // pred_region
          %217 = dma.done [#allocation3], 128
        $region36: #{tpu_custom_call.1} parent=31 // pred_fallthru
          _
        %s218 = sand.u32 %s21, 1
        %s219 = scalar_lea.sflag [#allocation6], %s218
        %s220 = sand.u32 %s67, 1
        %s221 = smul.addr %s220, 1024
        %s222 = scalar_lea.vmem [#allocation5], %s221
        // Predicated region
        $region37: #{tpu_custom_call.1} parent=31 // pred_check
          %p223 = pneg %p80
        $region38: #{tpu_custom_call.1} parent=31 // pred_check_branch
          %225 = sbr.rel (%p223) target = $region40
        $region39: #{tpu_custom_call.1} parent=31 // pred_region
          %226 = dma.done %s219, 16384
        $region40: #{tpu_custom_call.1} parent=31 // pred_fallthru
          _
        %s227 = sand.u32 %s21, 1
        %s228 = scalar_lea.sflag [#allocation6], %s227
        %s229 = sand.u32 %s93, 1
        %s230 = smul.addr %s229, 8
        %s231 = scalar_lea.vmem [#allocation7], %s230
        // Predicated region
        $region41: #{tpu_custom_call.1} parent=31 // pred_check
          %p232 = pneg %p106
        $region42: #{tpu_custom_call.1} parent=31 // pred_check_branch
          %234 = sbr.rel (%p232) target = $region44
        $region43: #{tpu_custom_call.1} parent=31 // pred_region
          %235 = dma.done %s228, 128
        $region44: #{tpu_custom_call.1} parent=31 // pred_fallthru
          _
        %p236 = pneg %p54
        %p237 = pneg %p51
        %s238 = sand.u32 %s21, 1
        %s239 = scalar_lea.sflag [#allocation6], %s238
        %s240 = sand.u32 %s67, 1
        %s241 = smul.addr %s240, 1024
        %s242 = scalar_lea.vmem [#allocation5], %s241
        %p243 = pneg %p80
        %p244 = pneg %p77
        %s245 = sand.u32 %s21, 1
        %s246 = scalar_lea.sflag [#allocation6], %s245
        %s247 = sand.u32 %s93, 1
        %s248 = smul.addr %s247, 8
        %s249 = scalar_lea.vmem [#allocation7], %s248
        %p250 = pneg %p106
        %p251 = pneg %p103
        %p252 = pneg %p134
        %p253 = pneg %p131
        %s254 = sand.u32 %s121, 1
        %s255 = scalar_lea.sflag [#allocation4], %s254
        %s256 = sand.u32 %s121, 1
        %s257 = smul.addr %s256, 32
        %s258 = scalar_lea.vmem [#allocation8], %s257
        %s259 = smul.u32 8, %s26
        %s260 = smul.u32 8, %s26
        %s261 = smul.u32 8, %s26
        %v262 = vld [vmem:[#allocation2] sm:$0xff]
        %v263 = vld [vmem:[%s222] sm:$0xff]
        %v264 = vld [vmem:[%s222 + $0x8] sm:$0xff]
        %v265 = vld [vmem:[%s222 + $0x10] sm:$0xff]
        %v266 = vld [vmem:[%s222 + $0x18] sm:$0xff]
        %v267 = vld [vmem:[%s222 + $0x20] sm:$0xff]
        %v268 = vld [vmem:[%s222 + $0x28] sm:$0xff]
        %v269 = vld [vmem:[%s222 + $0x30] sm:$0xff]
        %v270 = vld [vmem:[%s222 + $0x38] sm:$0xff]
        %v271 = vld [vmem:[%s222 + $0x40] sm:$0xff]
        %v272 = vld [vmem:[%s222 + $0x48] sm:$0xff]
        %v273 = vld [vmem:[%s222 + $0x50] sm:$0xff]
        %v274 = vld [vmem:[%s222 + $0x58] sm:$0xff]
        %v275 = vld [vmem:[%s222 + $0x60] sm:$0xff]
        %v276 = vld [vmem:[%s222 + $0x68] sm:$0xff]
        %v277 = vld [vmem:[%s222 + $0x70] sm:$0xff]
        %v278 = vld [vmem:[%s222 + $0x78] sm:$0xff]
        %v279 = vld [vmem:[%s222 + $0x80] sm:$0xff]
        %v280 = vld [vmem:[%s222 + $0x88] sm:$0xff]
        %v281 = vld [vmem:[%s222 + $0x90] sm:$0xff]
        %v282 = vld [vmem:[%s222 + $0x98] sm:$0xff]
        %v283 = vld [vmem:[%s222 + $0xa0] sm:$0xff]
        %v284 = vld [vmem:[%s222 + $0xa8] sm:$0xff]
        %v285 = vld [vmem:[%s222 + $0xb0] sm:$0xff]
        %v286 = vld [vmem:[%s222 + $0xb8] sm:$0xff]
        %v287 = vld [vmem:[%s222 + $0xc0] sm:$0xff]
        %v288 = vld [vmem:[%s222 + $0xc8] sm:$0xff]
        %v289 = vld [vmem:[%s222 + $0xd0] sm:$0xff]
        %v290 = vld [vmem:[%s222 + $0xd8] sm:$0xff]
        %v291 = vld [vmem:[%s222 + $0xe0] sm:$0xff]
        %v292 = vld [vmem:[%s222 + $0xe8] sm:$0xff]
        %v293 = vld [vmem:[%s222 + $0xf0] sm:$0xff]
        %v294 = vld [vmem:[%s222 + $0xf8] sm:$0xff]
        %v295 = vld [vmem:[%s222 + $0x100] sm:$0xff]
        %v296 = vld [vmem:[%s222 + $0x108] sm:$0xff]
        %v297 = vld [vmem:[%s222 + $0x110] sm:$0xff]
        %v298 = vld [vmem:[%s222 + $0x118] sm:$0xff]
        %v299 = vld [vmem:[%s222 + $0x120] sm:$0xff]
        %v300 = vld [vmem:[%s222 + $0x128] sm:$0xff]
        %v301 = vld [vmem:[%s222 + $0x130] sm:$0xff]
        %v302 = vld [vmem:[%s222 + $0x138] sm:$0xff]
        %v303 = vld [vmem:[%s222 + $0x140] sm:$0xff]
        %v304 = vld [vmem:[%s222 + $0x148] sm:$0xff]
        %v305 = vld [vmem:[%s222 + $0x150] sm:$0xff]
        %v306 = vld [vmem:[%s222 + $0x158] sm:$0xff]
        %v307 = vld [vmem:[%s222 + $0x160] sm:$0xff]
        %v308 = vld [vmem:[%s222 + $0x168] sm:$0xff]
        %v309 = vld [vmem:[%s222 + $0x170] sm:$0xff]
        %v310 = vld [vmem:[%s222 + $0x178] sm:$0xff]
        %v311 = vld [vmem:[%s222 + $0x180] sm:$0xff]
        %v312 = vld [vmem:[%s222 + $0x188] sm:$0xff]
        %v313 = vld [vmem:[%s222 + $0x190] sm:$0xff]
        %v314 = vld [vmem:[%s222 + $0x198] sm:$0xff]
        %v315 = vld [vmem:[%s222 + $0x1a0] sm:$0xff]
        %v316 = vld [vmem:[%s222 + $0x1a8] sm:$0xff]
        %v317 = vld [vmem:[%s222 + $0x1b0] sm:$0xff]
        %v318 = vld [vmem:[%s222 + $0x1b8] sm:$0xff]
        %v319 = vld [vmem:[%s222 + $0x1c0] sm:$0xff]
        %v320 = vld [vmem:[%s222 + $0x1c8] sm:$0xff]
        %v321 = vld [vmem:[%s222 + $0x1d0] sm:$0xff]
        %v322 = vld [vmem:[%s222 + $0x1d8] sm:$0xff]
        %v323 = vld [vmem:[%s222 + $0x1e0] sm:$0xff]
        %v324 = vld [vmem:[%s222 + $0x1e8] sm:$0xff]
        %v325 = vld [vmem:[%s222 + $0x1f0] sm:$0xff]
        %v326 = vld [vmem:[%s222 + $0x1f8] sm:$0xff]
        %v327 = vld [vmem:[%s222 + $0x200] sm:$0xff]
        %v328 = vld [vmem:[%s222 + $0x208] sm:$0xff]
        %v329 = vld [vmem:[%s222 + $0x210] sm:$0xff]
        %v330 = vld [vmem:[%s222 + $0x218] sm:$0xff]
        %v331 = vld [vmem:[%s222 + $0x220] sm:$0xff]
        %v332 = vld [vmem:[%s222 + $0x228] sm:$0xff]
        %v333 = vld [vmem:[%s222 + $0x230] sm:$0xff]
        %v334 = vld [vmem:[%s222 + $0x238] sm:$0xff]
        %v335 = vld [vmem:[%s222 + $0x240] sm:$0xff]
        %v336 = vld [vmem:[%s222 + $0x248] sm:$0xff]
        %v337 = vld [vmem:[%s222 + $0x250] sm:$0xff]
        %v338 = vld [vmem:[%s222 + $0x258] sm:$0xff]
        %v339 = vld [vmem:[%s222 + $0x260] sm:$0xff]
        %v340 = vld [vmem:[%s222 + $0x268] sm:$0xff]
        %v341 = vld [vmem:[%s222 + $0x270] sm:$0xff]
        %v342 = vld [vmem:[%s222 + $0x278] sm:$0xff]
        %v343 = vld [vmem:[%s222 + $0x280] sm:$0xff]
        %v344 = vld [vmem:[%s222 + $0x288] sm:$0xff]
        %v345 = vld [vmem:[%s222 + $0x290] sm:$0xff]
        %v346 = vld [vmem:[%s222 + $0x298] sm:$0xff]
        %v347 = vld [vmem:[%s222 + $0x2a0] sm:$0xff]
        %v348 = vld [vmem:[%s222 + $0x2a8] sm:$0xff]
        %v349 = vld [vmem:[%s222 + $0x2b0] sm:$0xff]
        %v350 = vld [vmem:[%s222 + $0x2b8] sm:$0xff]
        %v351 = vld [vmem:[%s222 + $0x2c0] sm:$0xff]
        %v352 = vld [vmem:[%s222 + $0x2c8] sm:$0xff]
        %v353 = vld [vmem:[%s222 + $0x2d0] sm:$0xff]
        %v354 = vld [vmem:[%s222 + $0x2d8] sm:$0xff]
        %v355 = vld [vmem:[%s222 + $0x2e0] sm:$0xff]
        %v356 = vld [vmem:[%s222 + $0x2e8] sm:$0xff]
        %v357 = vld [vmem:[%s222 + $0x2f0] sm:$0xff]
        %v358 = vld [vmem:[%s222 + $0x2f8] sm:$0xff]
        %v359 = vld [vmem:[%s222 + $0x300] sm:$0xff]
        %v360 = vld [vmem:[%s222 + $0x308] sm:$0xff]
        %v361 = vld [vmem:[%s222 + $0x310] sm:$0xff]
        %v362 = vld [vmem:[%s222 + $0x318] sm:$0xff]
        %v363 = vld [vmem:[%s222 + $0x320] sm:$0xff]
        %v364 = vld [vmem:[%s222 + $0x328] sm:$0xff]
        %v365 = vld [vmem:[%s222 + $0x330] sm:$0xff]
        %v366 = vld [vmem:[%s222 + $0x338] sm:$0xff]
        %v367 = vld [vmem:[%s222 + $0x340] sm:$0xff]
        %v368 = vld [vmem:[%s222 + $0x348] sm:$0xff]
        %v369 = vld [vmem:[%s222 + $0x350] sm:$0xff]
        %v370 = vld [vmem:[%s222 + $0x358] sm:$0xff]
        %v371 = vld [vmem:[%s222 + $0x360] sm:$0xff]
        %v372 = vld [vmem:[%s222 + $0x368] sm:$0xff]
        %v373 = vld [vmem:[%s222 + $0x370] sm:$0xff]
        %v374 = vld [vmem:[%s222 + $0x378] sm:$0xff]
        %v375 = vld [vmem:[%s222 + $0x380] sm:$0xff]
        %v376 = vld [vmem:[%s222 + $0x388] sm:$0xff]
        %v377 = vld [vmem:[%s222 + $0x390] sm:$0xff]
        %v378 = vld [vmem:[%s222 + $0x398] sm:$0xff]
        %v379 = vld [vmem:[%s222 + $0x3a0] sm:$0xff]
        %v380 = vld [vmem:[%s222 + $0x3a8] sm:$0xff]
        %v381 = vld [vmem:[%s222 + $0x3b0] sm:$0xff]
        %v382 = vld [vmem:[%s222 + $0x3b8] sm:$0xff]
        %v383 = vld [vmem:[%s222 + $0x3c0] sm:$0xff]
        %v384 = vld [vmem:[%s222 + $0x3c8] sm:$0xff]
        %v385 = vld [vmem:[%s222 + $0x3d0] sm:$0xff]
        %v386 = vld [vmem:[%s222 + $0x3d8] sm:$0xff]
        %v387 = vld [vmem:[%s222 + $0x3e0] sm:$0xff]
        %v388 = vld [vmem:[%s222 + $0x3e8] sm:$0xff]
        %v389 = vld [vmem:[%s222 + $0x3f0] sm:$0xff]
        %v390 = vld [vmem:[%s222 + $0x3f8] sm:$0xff]
        %v391 = vld [vmem:[%s231] sm:$0xff]
        %v393 = vlaneseq
        %v394 = vshrl.u32 %v393, 7
        %v395 = vsub.s32 0, %v394
        %v396 = vrot.slane %v391, %v395
        %v397 = vlaneseq
        %v398 = vshrl.u32 %v397, 7
        %v399 = vsub.s32 1, %v398
        %v400 = vrot.slane %v391, %v399
        %v401 = vlaneseq
        %v402 = vshrl.u32 %v401, 7
        %v403 = vsub.s32 2, %v402
        %v404 = vrot.slane %v391, %v403
        %v405 = vlaneseq
        %v406 = vshrl.u32 %v405, 7
        %v407 = vsub.s32 3, %v406
        %v408 = vrot.slane %v391, %v407
        %v409 = vlaneseq
        %v410 = vshrl.u32 %v409, 7
        %v411 = vsub.s32 4, %v410
        %v412 = vrot.slane %v391, %v411
        %v413 = vlaneseq
        %v414 = vshrl.u32 %v413, 7
        %v415 = vsub.s32 5, %v414
        %v416 = vrot.slane %v391, %v415
        %v417 = vlaneseq
        %v418 = vshrl.u32 %v417, 7
        %v419 = vsub.s32 6, %v418
        %v420 = vrot.slane %v391, %v419
        %v421 = vlaneseq
        %v422 = vshrl.u32 %v421, 7
        %v423 = vsub.s32 7, %v422
        %v424 = vrot.slane %v391, %v423
        %v434 = vunpack.c.l.b16 %v262
        %v435 = vunpack.c.h.b16 %v262
        %v436 = vpack.c.b16 %v434, %v434
        %v437 = vpack.c.b16 %v435, %v435
        %v568 = vunpack.c.l.b16 %v263
        %v569 = vunpack.c.h.b16 %v263
        %v570 = vunpack.c.l.b16 %v264
        %v571 = vunpack.c.h.b16 %v264
        %v572 = vunpack.c.l.b16 %v265
        %v573 = vunpack.c.h.b16 %v265
        %v574 = vunpack.c.l.b16 %v266
        %v575 = vunpack.c.h.b16 %v266
        %v576 = vunpack.c.l.b16 %v267
        %v577 = vunpack.c.h.b16 %v267
        %v578 = vunpack.c.l.b16 %v268
        %v579 = vunpack.c.h.b16 %v268
        %v580 = vunpack.c.l.b16 %v269
        %v581 = vunpack.c.h.b16 %v269
        %v582 = vunpack.c.l.b16 %v270
        %v583 = vunpack.c.h.b16 %v270
        %v584 = vunpack.c.l.b16 %v271
        %v585 = vunpack.c.h.b16 %v271
        %v586 = vunpack.c.l.b16 %v272
        %v587 = vunpack.c.h.b16 %v272
        %v588 = vunpack.c.l.b16 %v273
        %v589 = vunpack.c.h.b16 %v273
        %v590 = vunpack.c.l.b16 %v274
        %v591 = vunpack.c.h.b16 %v274
        %v592 = vunpack.c.l.b16 %v275
        %v593 = vunpack.c.h.b16 %v275
        %v594 = vunpack.c.l.b16 %v276
        %v595 = vunpack.c.h.b16 %v276
        %v596 = vunpack.c.l.b16 %v277
        %v597 = vunpack.c.h.b16 %v277
        %v598 = vunpack.c.l.b16 %v278
        %v599 = vunpack.c.h.b16 %v278
        %v600 = vunpack.c.l.b16 %v279
        %v601 = vunpack.c.h.b16 %v279
        %v602 = vunpack.c.l.b16 %v280
        %v603 = vunpack.c.h.b16 %v280
        %v604 = vunpack.c.l.b16 %v281
        %v605 = vunpack.c.h.b16 %v281
        %v606 = vunpack.c.l.b16 %v282
        %v607 = vunpack.c.h.b16 %v282
        %v608 = vunpack.c.l.b16 %v283
        %v609 = vunpack.c.h.b16 %v283
        %v610 = vunpack.c.l.b16 %v284
        %v611 = vunpack.c.h.b16 %v284
        %v612 = vunpack.c.l.b16 %v285
        %v613 = vunpack.c.h.b16 %v285
        %v614 = vunpack.c.l.b16 %v286
        %v615 = vunpack.c.h.b16 %v286
        %v616 = vunpack.c.l.b16 %v287
        %v617 = vunpack.c.h.b16 %v287
        %v618 = vunpack.c.l.b16 %v288
        %v619 = vunpack.c.h.b16 %v288
        %v620 = vunpack.c.l.b16 %v289
        %v621 = vunpack.c.h.b16 %v289
        %v622 = vunpack.c.l.b16 %v290
        %v623 = vunpack.c.h.b16 %v290
        %v624 = vunpack.c.l.b16 %v291
        %v625 = vunpack.c.h.b16 %v291
        %v626 = vunpack.c.l.b16 %v292
        %v627 = vunpack.c.h.b16 %v292
        %v628 = vunpack.c.l.b16 %v293
        %v629 = vunpack.c.h.b16 %v293
        %v630 = vunpack.c.l.b16 %v294
        %v631 = vunpack.c.h.b16 %v294
        %v632 = vunpack.c.l.b16 %v295
        %v633 = vunpack.c.h.b16 %v295
        %v634 = vunpack.c.l.b16 %v296
        %v635 = vunpack.c.h.b16 %v296
        %v636 = vunpack.c.l.b16 %v297
        %v637 = vunpack.c.h.b16 %v297
        %v638 = vunpack.c.l.b16 %v298
        %v639 = vunpack.c.h.b16 %v298
        %v640 = vunpack.c.l.b16 %v299
        %v641 = vunpack.c.h.b16 %v299
        %v642 = vunpack.c.l.b16 %v300
        %v643 = vunpack.c.h.b16 %v300
        %v644 = vunpack.c.l.b16 %v301
        %v645 = vunpack.c.h.b16 %v301
        %v646 = vunpack.c.l.b16 %v302
        %v647 = vunpack.c.h.b16 %v302
        %v648 = vunpack.c.l.b16 %v303
        %v649 = vunpack.c.h.b16 %v303
        %v650 = vunpack.c.l.b16 %v304
        %v651 = vunpack.c.h.b16 %v304
        %v652 = vunpack.c.l.b16 %v305
        %v653 = vunpack.c.h.b16 %v305
        %v654 = vunpack.c.l.b16 %v306
        %v655 = vunpack.c.h.b16 %v306
        %v656 = vunpack.c.l.b16 %v307
        %v657 = vunpack.c.h.b16 %v307
        %v658 = vunpack.c.l.b16 %v308
        %v659 = vunpack.c.h.b16 %v308
        %v660 = vunpack.c.l.b16 %v309
        %v661 = vunpack.c.h.b16 %v309
        %v662 = vunpack.c.l.b16 %v310
        %v663 = vunpack.c.h.b16 %v310
        %v664 = vunpack.c.l.b16 %v311
        %v665 = vunpack.c.h.b16 %v311
        %v666 = vunpack.c.l.b16 %v312
        %v667 = vunpack.c.h.b16 %v312
        %v668 = vunpack.c.l.b16 %v313
        %v669 = vunpack.c.h.b16 %v313
        %v670 = vunpack.c.l.b16 %v314
        %v671 = vunpack.c.h.b16 %v314
        %v672 = vunpack.c.l.b16 %v315
        %v673 = vunpack.c.h.b16 %v315
        %v674 = vunpack.c.l.b16 %v316
        %v675 = vunpack.c.h.b16 %v316
        %v676 = vunpack.c.l.b16 %v317
        %v677 = vunpack.c.h.b16 %v317
        %v678 = vunpack.c.l.b16 %v318
        %v679 = vunpack.c.h.b16 %v318
        %v680 = vunpack.c.l.b16 %v319
        %v681 = vunpack.c.h.b16 %v319
        %v682 = vunpack.c.l.b16 %v320
        %v683 = vunpack.c.h.b16 %v320
        %v684 = vunpack.c.l.b16 %v321
        %v685 = vunpack.c.h.b16 %v321
        %v686 = vunpack.c.l.b16 %v322
        %v687 = vunpack.c.h.b16 %v322
        %v688 = vunpack.c.l.b16 %v323
        %v689 = vunpack.c.h.b16 %v323
        %v690 = vunpack.c.l.b16 %v324
        %v691 = vunpack.c.h.b16 %v324
        %v692 = vunpack.c.l.b16 %v325
        %v693 = vunpack.c.h.b16 %v325
        %v694 = vunpack.c.l.b16 %v326
        %v695 = vunpack.c.h.b16 %v326
        %v696 = vunpack.c.l.b16 %v327
        %v697 = vunpack.c.h.b16 %v327
        %v698 = vunpack.c.l.b16 %v328
        %v699 = vunpack.c.h.b16 %v328
        %v700 = vunpack.c.l.b16 %v329
        %v701 = vunpack.c.h.b16 %v329
        %v702 = vunpack.c.l.b16 %v330
        %v703 = vunpack.c.h.b16 %v330
        %v704 = vunpack.c.l.b16 %v331
        %v705 = vunpack.c.h.b16 %v331
        %v706 = vunpack.c.l.b16 %v332
        %v707 = vunpack.c.h.b16 %v332
        %v708 = vunpack.c.l.b16 %v333
        %v709 = vunpack.c.h.b16 %v333
        %v710 = vunpack.c.l.b16 %v334
        %v711 = vunpack.c.h.b16 %v334
        %v712 = vunpack.c.l.b16 %v335
        %v713 = vunpack.c.h.b16 %v335
        %v714 = vunpack.c.l.b16 %v336
        %v715 = vunpack.c.h.b16 %v336
        %v716 = vunpack.c.l.b16 %v337
        %v717 = vunpack.c.h.b16 %v337
        %v718 = vunpack.c.l.b16 %v338
        %v719 = vunpack.c.h.b16 %v338
        %v720 = vunpack.c.l.b16 %v339
        %v721 = vunpack.c.h.b16 %v339
        %v722 = vunpack.c.l.b16 %v340
        %v723 = vunpack.c.h.b16 %v340
        %v724 = vunpack.c.l.b16 %v341
        %v725 = vunpack.c.h.b16 %v341
        %v726 = vunpack.c.l.b16 %v342
        %v727 = vunpack.c.h.b16 %v342
        %v728 = vunpack.c.l.b16 %v343
        %v729 = vunpack.c.h.b16 %v343
        %v730 = vunpack.c.l.b16 %v344
        %v731 = vunpack.c.h.b16 %v344
        %v732 = vunpack.c.l.b16 %v345
        %v733 = vunpack.c.h.b16 %v345
        %v734 = vunpack.c.l.b16 %v346
        %v735 = vunpack.c.h.b16 %v346
        %v736 = vunpack.c.l.b16 %v347
        %v737 = vunpack.c.h.b16 %v347
        %v738 = vunpack.c.l.b16 %v348
        %v739 = vunpack.c.h.b16 %v348
        %v740 = vunpack.c.l.b16 %v349
        %v741 = vunpack.c.h.b16 %v349
        %v742 = vunpack.c.l.b16 %v350
        %v743 = vunpack.c.h.b16 %v350
        %v744 = vunpack.c.l.b16 %v351
        %v745 = vunpack.c.h.b16 %v351
        %v746 = vunpack.c.l.b16 %v352
        %v747 = vunpack.c.h.b16 %v352
        %v748 = vunpack.c.l.b16 %v353
        %v749 = vunpack.c.h.b16 %v353
        %v750 = vunpack.c.l.b16 %v354
        %v751 = vunpack.c.h.b16 %v354
        %v752 = vunpack.c.l.b16 %v355
        %v753 = vunpack.c.h.b16 %v355
        %v754 = vunpack.c.l.b16 %v356
        %v755 = vunpack.c.h.b16 %v356
        %v756 = vunpack.c.l.b16 %v357
        %v757 = vunpack.c.h.b16 %v357
        %v758 = vunpack.c.l.b16 %v358
        %v759 = vunpack.c.h.b16 %v358
        %v760 = vunpack.c.l.b16 %v359
        %v761 = vunpack.c.h.b16 %v359
        %v762 = vunpack.c.l.b16 %v360
        %v763 = vunpack.c.h.b16 %v360
        %v764 = vunpack.c.l.b16 %v361
        %v765 = vunpack.c.h.b16 %v361
        %v766 = vunpack.c.l.b16 %v362
        %v767 = vunpack.c.h.b16 %v362
        %v768 = vunpack.c.l.b16 %v363
        %v769 = vunpack.c.h.b16 %v363
        %v770 = vunpack.c.l.b16 %v364
        %v771 = vunpack.c.h.b16 %v364
        %v772 = vunpack.c.l.b16 %v365
        %v773 = vunpack.c.h.b16 %v365
        %v774 = vunpack.c.l.b16 %v366
        %v775 = vunpack.c.h.b16 %v366
        %v776 = vunpack.c.l.b16 %v367
        %v777 = vunpack.c.h.b16 %v367
        %v778 = vunpack.c.l.b16 %v368
        %v779 = vunpack.c.h.b16 %v368
        %v780 = vunpack.c.l.b16 %v369
        %v781 = vunpack.c.h.b16 %v369
        %v782 = vunpack.c.l.b16 %v370
        %v783 = vunpack.c.h.b16 %v370
        %v784 = vunpack.c.l.b16 %v371
        %v785 = vunpack.c.h.b16 %v371
        %v786 = vunpack.c.l.b16 %v372
        %v787 = vunpack.c.h.b16 %v372
        %v788 = vunpack.c.l.b16 %v373
        %v789 = vunpack.c.h.b16 %v373
        %v790 = vunpack.c.l.b16 %v374
        %v791 = vunpack.c.h.b16 %v374
        %v792 = vunpack.c.l.b16 %v375
        %v793 = vunpack.c.h.b16 %v375
        %v794 = vunpack.c.l.b16 %v376
        %v795 = vunpack.c.h.b16 %v376
        %v796 = vunpack.c.l.b16 %v377
        %v797 = vunpack.c.h.b16 %v377
        %v798 = vunpack.c.l.b16 %v378
        %v799 = vunpack.c.h.b16 %v378
        %v800 = vunpack.c.l.b16 %v379
        %v801 = vunpack.c.h.b16 %v379
        %v802 = vunpack.c.l.b16 %v380
        %v803 = vunpack.c.h.b16 %v380
        %v804 = vunpack.c.l.b16 %v381
        %v805 = vunpack.c.h.b16 %v381
        %v806 = vunpack.c.l.b16 %v382
        %v807 = vunpack.c.h.b16 %v382
        %v808 = vunpack.c.l.b16 %v383
        %v809 = vunpack.c.h.b16 %v383
        %v810 = vunpack.c.l.b16 %v384
        %v811 = vunpack.c.h.b16 %v384
        %v812 = vunpack.c.l.b16 %v385
        %v813 = vunpack.c.h.b16 %v385
        %v814 = vunpack.c.l.b16 %v386
        %v815 = vunpack.c.h.b16 %v386
        %v816 = vunpack.c.l.b16 %v387
        %v817 = vunpack.c.h.b16 %v387
        %v818 = vunpack.c.l.b16 %v388
        %v819 = vunpack.c.h.b16 %v388
        %v820 = vunpack.c.l.b16 %v389
        %v821 = vunpack.c.h.b16 %v389
        %v822 = vunpack.c.l.b16 %v390
        %v823 = vunpack.c.h.b16 %v390
        %v824 = vpack.c.b16 %v576, %v568
        %v825 = vpack.c.b16 %v577, %v569
        %v826 = vpack.c.b16 %v578, %v570
        %v827 = vpack.c.b16 %v579, %v571
        %v828 = vpack.c.b16 %v580, %v572
        %v829 = vpack.c.b16 %v581, %v573
        %v830 = vpack.c.b16 %v582, %v574
        %v831 = vpack.c.b16 %v583, %v575
        %v832 = vpack.c.b16 %v592, %v584
        %v833 = vpack.c.b16 %v593, %v585
        %v834 = vpack.c.b16 %v594, %v586
        %v835 = vpack.c.b16 %v595, %v587
        %v836 = vpack.c.b16 %v596, %v588
        %v837 = vpack.c.b16 %v597, %v589
        %v838 = vpack.c.b16 %v598, %v590
        %v839 = vpack.c.b16 %v599, %v591
        %v840 = vpack.c.b16 %v608, %v600
        %v841 = vpack.c.b16 %v609, %v601
        %v842 = vpack.c.b16 %v610, %v602
        %v843 = vpack.c.b16 %v611, %v603
        %v844 = vpack.c.b16 %v612, %v604
        %v845 = vpack.c.b16 %v613, %v605
        %v846 = vpack.c.b16 %v614, %v606
        %v847 = vpack.c.b16 %v615, %v607
        %v848 = vpack.c.b16 %v624, %v616
        %v849 = vpack.c.b16 %v625, %v617
        %v850 = vpack.c.b16 %v626, %v618
        %v851 = vpack.c.b16 %v627, %v619
        %v852 = vpack.c.b16 %v628, %v620
        %v853 = vpack.c.b16 %v629, %v621
        %v854 = vpack.c.b16 %v630, %v622
        %v855 = vpack.c.b16 %v631, %v623
        %v856 = vpack.c.b16 %v640, %v632
        %v857 = vpack.c.b16 %v641, %v633
        %v858 = vpack.c.b16 %v642, %v634
        %v859 = vpack.c.b16 %v643, %v635
        %v860 = vpack.c.b16 %v644, %v636
        %v861 = vpack.c.b16 %v645, %v637
        %v862 = vpack.c.b16 %v646, %v638
        %v863 = vpack.c.b16 %v647, %v639
        %v864 = vpack.c.b16 %v656, %v648
        %v865 = vpack.c.b16 %v657, %v649
        %v866 = vpack.c.b16 %v658, %v650
        %v867 = vpack.c.b16 %v659, %v651
        %v868 = vpack.c.b16 %v660, %v652
        %v869 = vpack.c.b16 %v661, %v653
        %v870 = vpack.c.b16 %v662, %v654
        %v871 = vpack.c.b16 %v663, %v655
        %v872 = vpack.c.b16 %v672, %v664
        %v873 = vpack.c.b16 %v673, %v665
        %v874 = vpack.c.b16 %v674, %v666
        %v875 = vpack.c.b16 %v675, %v667
        %v876 = vpack.c.b16 %v676, %v668
        %v877 = vpack.c.b16 %v677, %v669
        %v878 = vpack.c.b16 %v678, %v670
        %v879 = vpack.c.b16 %v679, %v671
        %v880 = vpack.c.b16 %v688, %v680
        %v881 = vpack.c.b16 %v689, %v681
        %v882 = vpack.c.b16 %v690, %v682
        %v883 = vpack.c.b16 %v691, %v683
        %v884 = vpack.c.b16 %v692, %v684
        %v885 = vpack.c.b16 %v693, %v685
        %v886 = vpack.c.b16 %v694, %v686
        %v887 = vpack.c.b16 %v695, %v687
        %v888 = vpack.c.b16 %v704, %v696
        %v889 = vpack.c.b16 %v705, %v697
        %v890 = vpack.c.b16 %v706, %v698
        %v891 = vpack.c.b16 %v707, %v699
        %v892 = vpack.c.b16 %v708, %v700
        %v893 = vpack.c.b16 %v709, %v701
        %v894 = vpack.c.b16 %v710, %v702
        %v895 = vpack.c.b16 %v711, %v703
        %v896 = vpack.c.b16 %v720, %v712
        %v897 = vpack.c.b16 %v721, %v713
        %v898 = vpack.c.b16 %v722, %v714
        %v899 = vpack.c.b16 %v723, %v715
        %v900 = vpack.c.b16 %v724, %v716
        %v901 = vpack.c.b16 %v725, %v717
        %v902 = vpack.c.b16 %v726, %v718
        %v903 = vpack.c.b16 %v727, %v719
        %v904 = vpack.c.b16 %v736, %v728
        %v905 = vpack.c.b16 %v737, %v729
        %v906 = vpack.c.b16 %v738, %v730
        %v907 = vpack.c.b16 %v739, %v731
        %v908 = vpack.c.b16 %v740, %v732
        %v909 = vpack.c.b16 %v741, %v733
        %v910 = vpack.c.b16 %v742, %v734
        %v911 = vpack.c.b16 %v743, %v735
        %v912 = vpack.c.b16 %v752, %v744
        %v913 = vpack.c.b16 %v753, %v745
        %v914 = vpack.c.b16 %v754, %v746
        %v915 = vpack.c.b16 %v755, %v747
        %v916 = vpack.c.b16 %v756, %v748
        %v917 = vpack.c.b16 %v757, %v749
        %v918 = vpack.c.b16 %v758, %v750
        %v919 = vpack.c.b16 %v759, %v751
        %v920 = vpack.c.b16 %v768, %v760
        %v921 = vpack.c.b16 %v769, %v761
        %v922 = vpack.c.b16 %v770, %v762
        %v923 = vpack.c.b16 %v771, %v763
        %v924 = vpack.c.b16 %v772, %v764
        %v925 = vpack.c.b16 %v773, %v765
        %v926 = vpack.c.b16 %v774, %v766
        %v927 = vpack.c.b16 %v775, %v767
        %v928 = vpack.c.b16 %v784, %v776
        %v929 = vpack.c.b16 %v785, %v777
        %v930 = vpack.c.b16 %v786, %v778
        %v931 = vpack.c.b16 %v787, %v779
        %v932 = vpack.c.b16 %v788, %v780
        %v933 = vpack.c.b16 %v789, %v781
        %v934 = vpack.c.b16 %v790, %v782
        %v935 = vpack.c.b16 %v791, %v783
        %v936 = vpack.c.b16 %v800, %v792
        %v937 = vpack.c.b16 %v801, %v793
        %v938 = vpack.c.b16 %v802, %v794
        %v939 = vpack.c.b16 %v803, %v795
        %v940 = vpack.c.b16 %v804, %v796
        %v941 = vpack.c.b16 %v805, %v797
        %v942 = vpack.c.b16 %v806, %v798
        %v943 = vpack.c.b16 %v807, %v799
        %v944 = vpack.c.b16 %v816, %v808
        %v945 = vpack.c.b16 %v817, %v809
        %v946 = vpack.c.b16 %v818, %v810
        %v947 = vpack.c.b16 %v819, %v811
        %v948 = vpack.c.b16 %v820, %v812
        %v949 = vpack.c.b16 %v821, %v813
        %v950 = vpack.c.b16 %v822, %v814
        %v951 = vpack.c.b16 %v823, %v815
        %1080 = vmatprep.subr.bf16.mxu0 %v881
        %1081 = vmatpush1.bf16.msra.mxu0 %v880
        %1082 = vmatprep.subr.bf16.mxu0 %v873
        %1083 = vmatpush1.bf16.msra.mxu0 %v872
        %1084 = vmatprep.subr.bf16.mxu0 %v865
        %1085 = vmatpush1.bf16.msra.mxu0 %v864
        %1086 = vmatprep.subr.bf16.mxu0 %v857
        %1087 = vmatpush1.bf16.msra.mxu0 %v856
        %1088 = vmatprep.subr.bf16.mxu0 %v849
        %1089 = vmatpush1.bf16.msra.mxu0 %v848
        %1090 = vmatprep.subr.bf16.mxu0 %v841
        %1091 = vmatpush1.bf16.msra.mxu0 %v840
        %1092 = vmatprep.subr.bf16.mxu0 %v833
        %1093 = vmatpush1.bf16.msra.mxu0 %v832
        %1094 = vmatprep.subr.bf16.mxu0 %v825
        %1095 = vmatpush1.bf16.msra.mxu0 %v824
        %1096 = vmatprep.subr.bf16.mxu0 %v945
        %1097 = vmatpush2.bf16.msra.mxu0 %v944
        %1098 = vmatprep.subr.bf16.mxu0 %v937
        %1099 = vmatpush2.bf16.msra.mxu0 %v936
        %1100 = vmatprep.subr.bf16.mxu0 %v929
        %1101 = vmatpush2.bf16.msra.mxu0 %v928
        %1102 = vmatprep.subr.bf16.mxu0 %v921
        %1103 = vmatpush2.bf16.msra.mxu0 %v920
        %1104 = vmatprep.subr.bf16.mxu0 %v913
        %1105 = vmatpush2.bf16.msra.mxu0 %v912
        %1106 = vmatprep.subr.bf16.mxu0 %v905
        %1107 = vmatpush2.bf16.msra.mxu0 %v904
        %1108 = vmatprep.subr.bf16.mxu0 %v897
        %1109 = vmatpush2.bf16.msra.mxu0 %v896
        %1110 = vmatprep.subr.bf16.mxu0 %v889
        %1111 = vmatpush2.bf16.msra.mxu0 %v888
        %1112 = vmatprep.mubr.bf16.mxu0 %v437
        %1113 = vmatmul.mubr.bf16.gmra.mxu0 %v436
        %v1114 = vpop.f32.mrf.mxu0
        %v1115 = vadd.f32 %v396, %v1114
        %v1116 = vpop.f32.mrf.mxu0
        %v1117 = vadd.f32 %v400, %v1116
        %v1118 = vpop.f32.mrf.mxu0
        %v1119 = vpop.f32.mrf.mxu0
        %1120 = vdwg.mxu0
        %1121 = vmatprep.subr.bf16.mxu0 %v883
        %1122 = vmatpush1.bf16.msra.mxu0 %v882
        %1123 = vmatprep.subr.bf16.mxu0 %v875
        %1124 = vmatpush1.bf16.msra.mxu0 %v874
        %1125 = vmatprep.subr.bf16.mxu0 %v867
        %1126 = vmatpush1.bf16.msra.mxu0 %v866
        %1127 = vmatprep.subr.bf16.mxu0 %v859
        %1128 = vmatpush1.bf16.msra.mxu0 %v858
        %1129 = vmatprep.subr.bf16.mxu0 %v851
        %1130 = vmatpush1.bf16.msra.mxu0 %v850
        %1131 = vmatprep.subr.bf16.mxu0 %v843
        %1132 = vmatpush1.bf16.msra.mxu0 %v842
        %1133 = vmatprep.subr.bf16.mxu0 %v835
        %1134 = vmatpush1.bf16.msra.mxu0 %v834
        %1135 = vmatprep.subr.bf16.mxu0 %v827
        %1136 = vmatpush1.bf16.msra.mxu0 %v826
        %1137 = vmatprep.subr.bf16.mxu0 %v947
        %1138 = vmatpush2.bf16.msra.mxu0 %v946
        %1139 = vmatprep.subr.bf16.mxu0 %v939
        %1140 = vmatpush2.bf16.msra.mxu0 %v938
        %1141 = vmatprep.subr.bf16.mxu0 %v931
        %1142 = vmatpush2.bf16.msra.mxu0 %v930
        %1143 = vmatprep.subr.bf16.mxu0 %v923
        %1144 = vmatpush2.bf16.msra.mxu0 %v922
        %1145 = vmatprep.subr.bf16.mxu0 %v915
        %1146 = vmatpush2.bf16.msra.mxu0 %v914
        %1147 = vmatprep.subr.bf16.mxu0 %v907
        %1148 = vmatpush2.bf16.msra.mxu0 %v906
        %1149 = vmatprep.subr.bf16.mxu0 %v899
        %1150 = vmatpush2.bf16.msra.mxu0 %v898
        %1151 = vmatprep.subr.bf16.mxu0 %v891
        %1152 = vmatpush2.bf16.msra.mxu0 %v890
        %1153 = vmatprep.mubr.bf16.mxu0 %v437
        %1154 = vmatmul.mubr.bf16.gmra.mxu0 %v436
        %v1155 = vpop.f32.mrf.mxu0
        %v1156 = vadd.f32 %v404, %v1155
        %v1157 = vpop.f32.mrf.mxu0
        %v1158 = vadd.f32 %v408, %v1157
        %v1159 = vpop.f32.mrf.mxu0
        %v1160 = vpop.f32.mrf.mxu0
        %1161 = vdwg.mxu0
        %1162 = vmatprep.subr.bf16.mxu0 %v885
        %1163 = vmatpush1.bf16.msra.mxu0 %v884
        %1164 = vmatprep.subr.bf16.mxu0 %v877
        %1165 = vmatpush1.bf16.msra.mxu0 %v876
        %1166 = vmatprep.subr.bf16.mxu0 %v869
        %1167 = vmatpush1.bf16.msra.mxu0 %v868
        %1168 = vmatprep.subr.bf16.mxu0 %v861
        %1169 = vmatpush1.bf16.msra.mxu0 %v860
        %1170 = vmatprep.subr.bf16.mxu0 %v853
        %1171 = vmatpush1.bf16.msra.mxu0 %v852
        %1172 = vmatprep.subr.bf16.mxu0 %v845
        %1173 = vmatpush1.bf16.msra.mxu0 %v844
        %1174 = vmatprep.subr.bf16.mxu0 %v837
        %1175 = vmatpush1.bf16.msra.mxu0 %v836
        %1176 = vmatprep.subr.bf16.mxu0 %v829
        %1177 = vmatpush1.bf16.msra.mxu0 %v828
        %1178 = vmatprep.subr.bf16.mxu0 %v949
        %1179 = vmatpush2.bf16.msra.mxu0 %v948
        %1180 = vmatprep.subr.bf16.mxu0 %v941
        %1181 = vmatpush2.bf16.msra.mxu0 %v940
        %1182 = vmatprep.subr.bf16.mxu0 %v933
        %1183 = vmatpush2.bf16.msra.mxu0 %v932
        %1184 = vmatprep.subr.bf16.mxu0 %v925
        %1185 = vmatpush2.bf16.msra.mxu0 %v924
        %1186 = vmatprep.subr.bf16.mxu0 %v917
        %1187 = vmatpush2.bf16.msra.mxu0 %v916
        %1188 = vmatprep.subr.bf16.mxu0 %v909
        %1189 = vmatpush2.bf16.msra.mxu0 %v908
        %1190 = vmatprep.subr.bf16.mxu0 %v901
        %1191 = vmatpush2.bf16.msra.mxu0 %v900
        %1192 = vmatprep.subr.bf16.mxu0 %v893
        %1193 = vmatpush2.bf16.msra.mxu0 %v892
        %1194 = vmatprep.mubr.bf16.mxu0 %v437
        %1195 = vmatmul.mubr.bf16.gmra.mxu0 %v436
        %v1196 = vpop.f32.mrf.mxu0
        %v1197 = vadd.f32 %v412, %v1196
        %v1198 = vpop.f32.mrf.mxu0
        %v1199 = vadd.f32 %v416, %v1198
        %v1200 = vpop.f32.mrf.mxu0
        %v1201 = vpop.f32.mrf.mxu0
        %1202 = vdwg.mxu0
        %1203 = vmatprep.subr.bf16.mxu0 %v887
        %1204 = vmatpush1.bf16.msra.mxu0 %v886
        %1205 = vmatprep.subr.bf16.mxu0 %v879
        %1206 = vmatpush1.bf16.msra.mxu0 %v878
        %1207 = vmatprep.subr.bf16.mxu0 %v871
        %1208 = vmatpush1.bf16.msra.mxu0 %v870
        %1209 = vmatprep.subr.bf16.mxu0 %v863
        %1210 = vmatpush1.bf16.msra.mxu0 %v862
        %1211 = vmatprep.subr.bf16.mxu0 %v855
        %1212 = vmatpush1.bf16.msra.mxu0 %v854
        %1213 = vmatprep.subr.bf16.mxu0 %v847
        %1214 = vmatpush1.bf16.msra.mxu0 %v846
        %1215 = vmatprep.subr.bf16.mxu0 %v839
        %1216 = vmatpush1.bf16.msra.mxu0 %v838
        %1217 = vmatprep.subr.bf16.mxu0 %v831
        %1218 = vmatpush1.bf16.msra.mxu0 %v830
        %1219 = vmatprep.subr.bf16.mxu0 %v951
        %1220 = vmatpush2.bf16.msra.mxu0 %v950
        %1221 = vmatprep.subr.bf16.mxu0 %v943
        %1222 = vmatpush2.bf16.msra.mxu0 %v942
        %1223 = vmatprep.subr.bf16.mxu0 %v935
        %1224 = vmatpush2.bf16.msra.mxu0 %v934
        %1225 = vmatprep.subr.bf16.mxu0 %v927
        %1226 = vmatpush2.bf16.msra.mxu0 %v926
        %1227 = vmatprep.subr.bf16.mxu0 %v919
        %1228 = vmatpush2.bf16.msra.mxu0 %v918
        %1229 = vmatprep.subr.bf16.mxu0 %v911
        %1230 = vmatpush2.bf16.msra.mxu0 %v910
        %1231 = vmatprep.subr.bf16.mxu0 %v903
        %1232 = vmatpush2.bf16.msra.mxu0 %v902
        %1233 = vmatprep.subr.bf16.mxu0 %v895
        %1234 = vmatpush2.bf16.msra.mxu0 %v894
        %1235 = vmatprep.mubr.bf16.mxu0 %v437
        %1236 = vmatmul.mubr.bf16.gmra.mxu0 %v436
        %v1237 = vpop.f32.mrf.mxu0
        %v1238 = vadd.f32 %v420, %v1237
        %v1239 = vpop.f32.mrf.mxu0
        %v1240 = vadd.f32 %v424, %v1239
        %v1241 = vpop.f32.mrf.mxu0
        %v1242 = vpop.f32.mrf.mxu0
        %1243 = vdwg.mxu0
        %v1244 = vmax.f32 %v1115, 0.0
        %v1245 = vmax.f32 %v1117, 0.0
        %v1246 = vmax.f32 %v1156, 0.0
        %v1247 = vmax.f32 %v1158, 0.0
        %v1248 = vmax.f32 %v1197, 0.0
        %v1249 = vmax.f32 %v1199, 0.0
        %v1250 = vmax.f32 %v1238, 0.0
        %v1251 = vmax.f32 %v1240, 0.0
        %v1252 = vpack.c.bf16 %v1244, %v1244
        %v1253 = vpack.c.bf16 %v1245, %v1245
        %v1254 = vpack.c.bf16 %v1246, %v1246
        %v1255 = vpack.c.bf16 %v1247, %v1247
        %v1256 = vpack.c.bf16 %v1248, %v1248
        %v1257 = vpack.c.bf16 %v1249, %v1249
        %v1258 = vpack.c.bf16 %v1250, %v1250
        %v1259 = vpack.c.bf16 %v1251, %v1251
        %v1268 = vunpack.c.l.b16 %v1252
        %v1269 = vunpack.c.l.b16 %v1253
        %v1270 = vunpack.c.l.b16 %v1254
        %v1271 = vunpack.c.l.b16 %v1255
        %v1272 = vunpack.c.l.b16 %v1256
        %v1273 = vunpack.c.l.b16 %v1257
        %v1274 = vunpack.c.l.b16 %v1258
        %v1275 = vunpack.c.l.b16 %v1259
        %v1276 = vpack.c.b16 %v1269, %v1268
        %v1277 = vpack.c.b16 %v1271, %v1270
        %v1278 = vpack.c.b16 %v1273, %v1272
        %v1279 = vpack.c.b16 %v1275, %v1274
        %1284 = vst [vmem:[%s258] sm:$0xff] %v1276
        %1285 = vst [vmem:[%s258 + $0x8] sm:$0xff] %v1277
        %1286 = vst [vmem:[%s258 + $0x10] sm:$0xff] %v1278
        %1287 = vst [vmem:[%s258 + $0x18] sm:$0xff] %v1279
        %s1288 = sand.u32 %s121, 1
        %s1289 = scalar_lea.sflag [#allocation4], %s1288
        %s1290 = sand.u32 %s121, 1
        %s1291 = smul.addr %s1290, 32
        %s1292 = scalar_lea.vmem [#allocation8], %s1291
        // Predicated region
        $region45: #{tpu_custom_call.1} parent=31 // pred_check
          %p1293 = pneg %p131
        $region46: #{tpu_custom_call.1} parent=31 // pred_check_branch
          %1295 = sbr.rel (%p1293) target = $region48
        $region47: #{tpu_custom_call.1} parent=31 // pred_region
          %s1296 = smul.u32 8, %s26
          %s1298 = ssub.s32 512, 512
          %1299 = vsyncadd %s1289, %s1298
          %s1300 = smul.addr %s25, 16
          %s1301 = sadd.s32 %s1296, %s1300
          %s1302 = smul.addr %s1301, 64
          %s1303 = scalar_lea.hbm %s3, %s1302
          %s1305 = sshll.u32 %s1292, 4
          %s1306 = int_to_ptr.vmem [resolvable:$true] %s1305
          %1308 = dma.vmem_to_hbm [thread:$0]  %s1306, 512, %s1303, %s1289
        $region48: #{tpu_custom_call.1} parent=31 // pred_fallthru
          _
      $region32: #{tpu_custom_call.1} parent=5 // pred_fallthru
        _
      %p1309 = scmp.le.s32.totalorder 2, %s16
      // Predicated region
      $region49: #{tpu_custom_call.1} parent=5 // pred_check
        %p1310 = pneg %p1309
      $region50: #{tpu_custom_call.1} parent=5 // pred_check_branch
        %1312 = sbr.rel (%p1310) target = $region52
      $region51: #{tpu_custom_call.1} parent=5 // pred_region
        %s1313 = ssub.s32 %s16, 2
        // Predicated region
        $region53: #{tpu_custom_call.1} parent=51 // pred_check
          %p1314 = pneg %p137
        $region54: #{tpu_custom_call.1} parent=51 // pred_check_branch
          %1316 = sbr.rel (%p1314) target = $region56
        $region55: #{tpu_custom_call.1} parent=51 // pred_region
          %s1317 = sand.u32 %s122, 1
          %s1318 = scalar_lea.sflag [#allocation4], %s1317
          %s1319 = sand.u32 %s122, 1
          %s1320 = smul.addr %s1319, 32
          %s1321 = scalar_lea.vmem [#allocation8], %s1320
          %1322 = dma.done %s1318, 512
        $region56: #{tpu_custom_call.1} parent=51 // pred_fallthru
          _
      $region52: #{tpu_custom_call.1} parent=5 // pred_fallthru
        _
    $region6: #{tpu_custom_call.1} parent=1 // loop_footer
      %s20 = sadd.s32 1, %s16
    $region7: #{tpu_custom_call.1} parent=1 // loop_footer_branch
      %15 = sbr.rel target = $region3
    $region8: #{tpu_custom_call.1} parent=1 // loop_exit
      _
    %1323 = vsyncpa [#allocation3], 1
    %s1324 = scalar_lea.sflag [#allocation3], 1
    %1325 = vsyncpa %s1324, 1
    %1326 = vsyncpa [#allocation6], 1
    %s1327 = scalar_lea.sflag [#allocation6], 1
    %1328 = vsyncpa %s1327, 1
    %1329 = vsyncpa [#allocation4], 1
    %s1330 = scalar_lea.sflag [#allocation4], 1
    %1331 = vsyncpa %s1330, 1

</llo_original>
